<compile_context>
chip_gen: v6e
topology: v6e:2x2x1
jax: 0.10.0
libtpu: 0.0.40
codegen_flags: <defaults>
</compile_context>

<pallas_src>
import functools

import jax
import jax.numpy as jnp
from jax import lax
from jax.experimental import pallas as pl
from jax.experimental.pallas import tpu as pltpu

LANES = 128        # lane width (last dim of every tile)
CHUNK_ROWS = 512   # inner compute-chunk rows: (512,128) f32 temp = 256 KiB


def _chip_config():
    """Returns (num_core_splits, tm_max_rows, vmem_limit_bytes_or_None)."""
    kind = ""
    try:
        kind = jax.devices()[0].device_kind.lower()
    except Exception:
        pass
    if "v7" in kind or "7x" in kind:
        # 2 TensorCores/chip, 64 MiB VMEM/TC, ~3.2 TB/s HBM.
        return 2, 8192, 48 * 1024 * 1024
    if "v6" in kind:
        # 1 TC/chip, 128 MiB physical VMEM (32 MiB default scoped).
        return 1, 8192, 64 * 1024 * 1024
    if "v5" in kind:
        # v5e-class: 1 TC, 128 MiB physical VMEM but 16 MiB default scoped.
        return 1, 4096, 32 * 1024 * 1024
    # Unknown / older generation: conservative defaults.
    return 1, 2048, None


def _bowling_loss_kernel(p_ref, t_ref, out_ref, acc_sq_ref, acc_ab_ref,
                         *, n_valid, num_blocks, rows_per_chunk,
                         penalty_weight, inv_n):
    c = pl.program_id(0)            # core-split index ("parallel")
    i = pl.program_id(1)            # reduction step   ("arbitrary")
    steps = pl.num_programs(1)

    @pl.when(i == 0)
    def _init():
        acc_sq_ref[...] = jnp.zeros_like(acc_sq_ref)
        acc_ab_ref[...] = jnp.zeros_like(acc_ab_ref)

    bm, bl = p_ref.shape            # (tm, 128); tm % rows_per_chunk == 0
    ch = rows_per_chunk
    n_chunks = bm // ch
    sub = acc_sq_ref.shape[0]       # 8
    b = c * steps + i               # logical (unclamped) block index

    def accum(d):
        # (ch,128) f32 -> (ch//8, 8, 128) leading-axis reduce: pure-VPU vreg
        # adds (no XLU), then one tiny (8,128) accumulator update.
        acc_sq_ref[...] += (d * d).reshape(ch // sub, sub, bl).sum(axis=0)
        acc_ab_ref[...] += jnp.abs(d).reshape(ch // sub, sub, bl).sum(axis=0)

    # Interior blocks: bare streaming path, no masking work at all.
    @pl.when(b < num_blocks - 1)
    def _interior():
        @pl.loop(0, n_chunks)
        def _(j):
            r0 = pl.multiple_of(j * ch, ch)
            d = (p_ref[pl.ds(r0, ch), :].astype(jnp.float32)
                 - t_ref[pl.ds(r0, ch), :].astype(jnp.float32))
            accum(d)

    # Tail path: the final real block (wrapper pad + out-of-array rows of a
    # partial block) AND any clamped phantom block (core split, odd block
    # count) are masked against the true element count.
    @pl.when(b >= num_blocks - 1)
    def _tail():
        row = lax.broadcasted_iota(jnp.int32, (ch, bl), 0)
        col = lax.broadcasted_iota(jnp.int32, (ch, bl), 1)

        @pl.loop(0, n_chunks)
        def _(j):
            r0 = pl.multiple_of(j * ch, ch)
            d = (p_ref[pl.ds(r0, ch), :].astype(jnp.float32)
                 - t_ref[pl.ds(r0, ch), :].astype(jnp.float32))
            idx = (b * bm + r0 + row) * bl + col     # global flat element idx
            d = jnp.where(idx < n_valid, d, 0.0)
            accum(d)

    @pl.when(i == steps - 1)
    def _finalize():
        sse = jnp.sum(acc_sq_ref[...])
        sae = jnp.sum(acc_ab_ref[...])
        partial = (sse + penalty_weight * sae) * inv_n   # this core's share
        out_ref[...] = jnp.broadcast_to(partial, out_ref.shape)


def bowling_loss_ref(predictions, targets, penalty_weight=0.5):
    d = predictions.astype(jnp.float32) - targets.astype(jnp.float32)
    return jnp.mean(d * d) + penalty_weight * jnp.mean(jnp.abs(d))


def bowling_loss(predictions, targets, penalty_weight=0.5, *, force_pallas=False):
    assert predictions.shape == targets.shape
    n = int(predictions.size)
    assert 0 < n < 2**31

    dtype = jnp.promote_types(predictions.dtype, targets.dtype)
    p = predictions.reshape(-1).astype(dtype)
    t = targets.reshape(-1).astype(dtype)
    itemsize = jnp.dtype(dtype).itemsize

    # Fast path: tiny inputs are pure launch / per-step overhead for a Pallas
    # kernel; a fused XLA elementwise + reduce wins outright.
    if not force_pallas and n * 2 * itemsize < (2 << 20):
        return bowling_loss_ref(p, t, penalty_weight)

    sub = max(8, 32 // itemsize)          # packed sublanes: f32=8 bf16=16 i8=32
    splits, tm_max, vmem_limit = _chip_config()

    # Pad to a whole number of (sub, 128) row-groups; everything past n is
    # masked in-kernel (the pad values are zeros anyway).
    padded = pl.cdiv(n, sub * LANES) * (sub * LANES)
    if padded != n:
        p = jnp.pad(p, (0, padded - n))
        t = jnp.pad(t, (0, padded - n))
    m = padded // LANES                   # rows; multiple of sub, >= sub
    p2 = p.reshape(m, LANES)
    t2 = t.reshape(m, LANES)

    ch = min(CHUNK_ROWS, m)               # inner chunk rows (multiple of sub)
    tm = max((min(tm_max, m) // ch) * ch, ch)   # rows per grid step
    num_blocks = pl.cdiv(m, tm)
    steps = pl.cdiv(num_blocks, splits)

    def in_index_map(c, i):
        # Clamp so an odd block count's phantom trailing block stays in range;
        # its contribution is masked to zero inside the kernel.
        return (jnp.minimum(c * steps + i, num_blocks - 1), 0)

    kernel = functools.partial(
        _bowling_loss_kernel,
        n_valid=n,                              # python constants only:
        num_blocks=int(num_blocks),             # no captured jax arrays
        rows_per_chunk=int(ch),
        penalty_weight=float(penalty_weight),
        inv_n=1.0 / float(n),
    )

    partials = pl.pallas_call(
        kernel,
        out_shape=jax.ShapeDtypeStruct((splits, 8, LANES), jnp.float32),
        grid_spec=pltpu.PrefetchScalarGridSpec(
            num_scalar_prefetch=0,
            grid=(splits, steps),
            in_specs=[
                pl.BlockSpec((tm, LANES), in_index_map),
                pl.BlockSpec((tm, LANES), in_index_map),
            ],
            out_specs=pl.BlockSpec((1, 8, LANES), lambda c, i: (c, 0, 0)),
            scratch_shapes=[
                pltpu.VMEM((8, LANES), jnp.float32),   # sum of squared diffs
                pltpu.VMEM((8, LANES), jnp.float32),   # sum of abs diffs
            ],
        ),
        compiler_params=pltpu.CompilerParams(
            dimension_semantics=("parallel", "arbitrary"),
            vmem_limit_bytes=vmem_limit,
        ),
    )(p2, t2)

    # Tiny final combine of the per-core scaled partials.
    return jnp.sum(partials[:, 0, 0])


if __name__ == "__main__":
    key = jax.random.PRNGKey(0)
    k1, k2 = jax.random.split(key)
    # Small shape consistent with a loss over regression outputs.
    shape = (2, 4, 16, 16)
    predictions = jax.random.normal(k1, shape, dtype=jnp.float32)
    targets = jax.random.normal(k2, shape, dtype=jnp.float32)

    ref = bowling_loss_ref(predictions, targets, penalty_weight=0.5)

    # Exercise the Pallas kernel itself on the demo shape.
    loss = bowling_loss(predictions, targets, penalty_weight=0.5,
                        force_pallas=True)
    jax.block_until_ready(loss)
    assert jnp.allclose(loss, ref, rtol=1e-5, atol=1e-5), (loss, ref)

    # Default path for tiny inputs (jnp fast path).
    loss_fast = bowling_loss(predictions, targets, penalty_weight=0.5)
    jax.block_until_ready(loss_fast)
    assert jnp.allclose(loss_fast, ref, rtol=1e-5, atol=1e-5), (loss_fast, ref)

    # Extra checks: ragged tails / partial last blocks, odd block counts
    # (phantom block on the v7x core split), bf16 sublane packing, and a
    # multi-block streaming case that takes the kernel path by default.
    checks = [
        ((1039, 128), jnp.float32, True),
        ((2100, 128), jnp.float32, True),
        ((3, 37, 5), jnp.float32, True),
        ((37, 300), jnp.bfloat16, True),
        ((1024, 2048), jnp.float32, False),   # big enough for the kernel path
    ]
    for case_idx, (shp, dt, force) in enumerate(checks):
        ka, kb = jax.random.split(jax.random.PRNGKey(case_idx + 1))
        p = jax.random.normal(ka, shp, dtype=jnp.float32).astype(dt)
        t = jax.random.normal(kb, shp, dtype=jnp.float32).astype(dt)
        got = bowling_loss(p, t, penalty_weight=0.5, force_pallas=force)
        jax.block_until_ready(got)
        want = bowling_loss_ref(p, t, penalty_weight=0.5)
        tol = 1e-3 if dt == jnp.bfloat16 else 1e-4
        assert jnp.allclose(got, want, rtol=tol, atol=tol), (shp, dt, got, want)

    print("KERNEL_OK")
</pallas_src>

<mosaic_0001>
module attributes {stable_mosaic.version = 11 : i64} {
  func.func @_bowling_loss_kernel(%arg0: i32, %arg1: i32, %arg2: memref<16x128xf32, #tpu.memory_space<vmem>>, %arg3: memref<16x128xf32, #tpu.memory_space<vmem>>, %arg4: memref<1x8x128xf32, #tpu.memory_space<vmem>>, %arg5: memref<8x128xf32, #tpu.memory_space<vmem>>, %arg6: memref<8x128xf32, #tpu.memory_space<vmem>>) attributes {dimension_semantics = [#tpu.dimension_semantics<parallel>, #tpu.dimension_semantics<arbitrary>], iteration_bounds = array<i64: 1, 1>, scalar_prefetch = 0 : i64, scratch_operands = 2 : i64, tpu.core_type = #tpu.core_type<tc>, window_params = [{transform_indices = @transform_0, window_bounds = array<i64: 16, 128>}, {transform_indices = @transform_1, window_bounds = array<i64: 16, 128>}, {transform_indices = @transform_2, window_bounds = array<i64: 1, 8, 128>}]} {
    %c0_i32 = arith.constant 0 : i32
    %0 = arith.cmpi eq, %arg1, %c0_i32 : i32
    %1 = arith.extui %0 : i1 to i32
    %c0_i32_0 = arith.constant 0 : i32
    %2 = arith.cmpi ne, %1, %c0_i32_0 : i32
    scf.if %2 {
      %cst = arith.constant 0.000000e+00 : f32
      %14 = vector.broadcast %cst : f32 to vector<8x128xf32>
      %c0 = arith.constant 0 : index
      %c0_7 = arith.constant 0 : index
      %15 = vector.load %arg5[%c0, %c0_7] : memref<8x128xf32, #tpu.memory_space<vmem>>, vector<8x128xf32>
      tpu.vector_store %arg5[%c0, %c0_7], %14 {strides = array<i32>} : memref<8x128xf32, #tpu.memory_space<vmem>>, vector<8x128xf32>,
      %cst_8 = arith.constant 0.000000e+00 : f32
      %16 = vector.broadcast %cst_8 : f32 to vector<8x128xf32>
      %c0_9 = arith.constant 0 : index
      %c0_10 = arith.constant 0 : index
      %17 = vector.load %arg6[%c0_9, %c0_10] : memref<8x128xf32, #tpu.memory_space<vmem>>, vector<8x128xf32>
      tpu.vector_store %arg6[%c0_9, %c0_10], %16 {strides = array<i32>} : memref<8x128xf32, #tpu.memory_space<vmem>>, vector<8x128xf32>,
    } else {
    }
    %c1_i32 = arith.constant 1 : i32
    %3 = arith.muli %arg0, %c1_i32 : i32
    %4 = arith.addi %3, %arg1 : i32
    %c0_i32_1 = arith.constant 0 : i32
    %5 = arith.cmpi slt, %4, %c0_i32_1 : i32
    %6 = arith.extui %5 : i1 to i32
    %c0_i32_2 = arith.constant 0 : i32
    %7 = arith.cmpi ne, %6, %c0_i32_2 : i32
    scf.if %7 {
      %c0_i32_7 = arith.constant 0 : i32
      %c1_i32_8 = arith.constant 1 : i32
      %14 = arith.muli %c0_i32_7, %c1_i32_8 : i32
      %c0_i32_9 = arith.constant 0 : i32
      %15 = arith.addi %c0_i32_9, %14 : i32
      %c16_i32 = arith.constant 16 : i32
      %16 = arith.muli %15, %c16_i32 : i32
      %17 = tpu.assume_multiple %16, 16 : i32
      %18 = arith.index_cast %17 : i32 to index
      %c0 = arith.constant 0 : index
      %19 = vector.load %arg2[%18, %c0] : memref<16x128xf32, #tpu.memory_space<vmem>>, vector<16x128xf32>
      %20 = arith.index_cast %17 : i32 to index
      %c0_10 = arith.constant 0 : index
      %21 = vector.load %arg3[%20, %c0_10] : memref<16x128xf32, #tpu.memory_space<vmem>>, vector<16x128xf32>
      %22 = arith.subf %19, %21 : vector<16x128xf32>
      %c0_11 = arith.constant 0 : index
      %c0_12 = arith.constant 0 : index
      %23 = vector.load %arg5[%c0_11, %c0_12] : memref<8x128xf32, #tpu.memory_space<vmem>>, vector<8x128xf32>
      %24 = arith.mulf %22, %22 : vector<16x128xf32>
      %25 = vector.shape_cast %24 : vector<16x128xf32> to vector<2x8x128xf32>
      %cst = arith.constant dense<0.000000e+00> : vector<8x128xf32>
      %26 = vector.multi_reduction <add>, %25, %cst [0] : vector<2x8x128xf32> to vector<8x128xf32>
      %27 = arith.addf %23, %26 : vector<8x128xf32>
      %c0_13 = arith.constant 0 : index
      %c0_14 = arith.constant 0 : index
      %28 = vector.load %arg5[%c0_13, %c0_14] : memref<8x128xf32, #tpu.memory_space<vmem>>, vector<8x128xf32>
      tpu.vector_store %arg5[%c0_13, %c0_14], %27 {strides = array<i32>} : memref<8x128xf32, #tpu.memory_space<vmem>>, vector<8x128xf32>,
      %c0_15 = arith.constant 0 : index
      %c0_16 = arith.constant 0 : index
      %29 = vector.load %arg6[%c0_15, %c0_16] : memref<8x128xf32, #tpu.memory_space<vmem>>, vector<8x128xf32>
      %30 = math.absf %22 : vector<16x128xf32>
      %31 = vector.shape_cast %30 : vector<16x128xf32> to vector<2x8x128xf32>
      %cst_17 = arith.constant dense<0.000000e+00> : vector<8x128xf32>
      %32 = vector.multi_reduction <add>, %31, %cst_17 [0] : vector<2x8x128xf32> to vector<8x128xf32>
      %33 = arith.addf %29, %32 : vector<8x128xf32>
      %c0_18 = arith.constant 0 : index
      %c0_19 = arith.constant 0 : index
      %34 = vector.load %arg6[%c0_18, %c0_19] : memref<8x128xf32, #tpu.memory_space<vmem>>, vector<8x128xf32>
      tpu.vector_store %arg6[%c0_18, %c0_19], %33 {strides = array<i32>} : memref<8x128xf32, #tpu.memory_space<vmem>>, vector<8x128xf32>,
      %c1_i32_20 = arith.constant 1 : i32
    } else {
    }
    %c0_i32_3 = arith.constant 0 : i32
    %8 = arith.cmpi sge, %4, %c0_i32_3 : i32
    %9 = arith.extui %8 : i1 to i32
    %c0_i32_4 = arith.constant 0 : i32
    %10 = arith.cmpi ne, %9, %c0_i32_4 : i32
    scf.if %10 {
      %14 = tpu.iota {dimensions = array<i32: 0>} : vector<16x128xi32>
      %15 = tpu.iota {dimensions = array<i32: 1>} : vector<16x128xi32>
      %c0_i32_7 = arith.constant 0 : i32
      %c1_i32_8 = arith.constant 1 : i32
      %16 = arith.muli %c0_i32_7, %c1_i32_8 : i32
      %c0_i32_9 = arith.constant 0 : i32
      %17 = arith.addi %c0_i32_9, %16 : i32
      %c16_i32 = arith.constant 16 : i32
      %18 = arith.muli %17, %c16_i32 : i32
      %19 = tpu.assume_multiple %18, 16 : i32
      %20 = arith.index_cast %19 : i32 to index
      %c0 = arith.constant 0 : index
      %21 = vector.load %arg2[%20, %c0] : memref<16x128xf32, #tpu.memory_space<vmem>>, vector<16x128xf32>
      %22 = arith.index_cast %19 : i32 to index
      %c0_10 = arith.constant 0 : index
      %23 = vector.load %arg3[%22, %c0_10] : memref<16x128xf32, #tpu.memory_space<vmem>>, vector<16x128xf32>
      %24 = arith.subf %21, %23 : vector<16x128xf32>
      %c16_i32_11 = arith.constant 16 : i32
      %25 = arith.muli %4, %c16_i32_11 : i32
      %26 = arith.addi %25, %19 : i32
      %27 = vector.broadcast %26 : i32 to vector<16x128xi32>
      %28 = arith.addi %27, %14 : vector<16x128xi32>
      %c128_i32 = arith.constant 128 : i32
      %29 = vector.broadcast %c128_i32 : i32 to vector<16x128xi32>
      %30 = arith.muli %28, %29 : vector<16x128xi32>
      %31 = arith.addi %30, %15 : vector<16x128xi32>
      %c2048_i32 = arith.constant 2048 : i32
      %32 = vector.broadcast %c2048_i32 : i32 to vector<16x128xi32>
      %33 = arith.cmpi slt, %31, %32 : vector<16x128xi32>
      %cst = arith.constant 0.000000e+00 : f32
      %34 = vector.broadcast %cst : f32 to vector<16x128xf32>
      %35 = arith.select %33, %24, %34 : vector<16x128xi1>, vector<16x128xf32>
      %c0_12 = arith.constant 0 : index
      %c0_13 = arith.constant 0 : index
      %36 = vector.load %arg5[%c0_12, %c0_13] : memref<8x128xf32, #tpu.memory_space<vmem>>, vector<8x128xf32>
      %37 = arith.mulf %35, %35 : vector<16x128xf32>
      %38 = vector.shape_cast %37 : vector<16x128xf32> to vector<2x8x128xf32>
      %cst_14 = arith.constant dense<0.000000e+00> : vector<8x128xf32>
      %39 = vector.multi_reduction <add>, %38, %cst_14 [0] : vector<2x8x128xf32> to vector<8x128xf32>
      %40 = arith.addf %36, %39 : vector<8x128xf32>
      %c0_15 = arith.constant 0 : index
      %c0_16 = arith.constant 0 : index
      %41 = vector.load %arg5[%c0_15, %c0_16] : memref<8x128xf32, #tpu.memory_space<vmem>>, vector<8x128xf32>
      tpu.vector_store %arg5[%c0_15, %c0_16], %40 {strides = array<i32>} : memref<8x128xf32, #tpu.memory_space<vmem>>, vector<8x128xf32>,
      %c0_17 = arith.constant 0 : index
      %c0_18 = arith.constant 0 : index
      %42 = vector.load %arg6[%c0_17, %c0_18] : memref<8x128xf32, #tpu.memory_space<vmem>>, vector<8x128xf32>
      %43 = math.absf %35 : vector<16x128xf32>
      %44 = vector.shape_cast %43 : vector<16x128xf32> to vector<2x8x128xf32>
      %cst_19 = arith.constant dense<0.000000e+00> : vector<8x128xf32>
      %45 = vector.multi_reduction <add>, %44, %cst_19 [0] : vector<2x8x128xf32> to vector<8x128xf32>
      %46 = arith.addf %42, %45 : vector<8x128xf32>
      %c0_20 = arith.constant 0 : index
      %c0_21 = arith.constant 0 : index
      %47 = vector.load %arg6[%c0_20, %c0_21] : memref<8x128xf32, #tpu.memory_space<vmem>>, vector<8x128xf32>
      tpu.vector_store %arg6[%c0_20, %c0_21], %46 {strides = array<i32>} : memref<8x128xf32, #tpu.memory_space<vmem>>, vector<8x128xf32>,
      %c1_i32_22 = arith.constant 1 : i32
    } else {
    }
    %c0_i32_5 = arith.constant 0 : i32
    %11 = arith.cmpi eq, %arg1, %c0_i32_5 : i32
    %12 = arith.extui %11 : i1 to i32
    %c0_i32_6 = arith.constant 0 : i32
    %13 = arith.cmpi ne, %12, %c0_i32_6 : i32
    scf.if %13 {
      %c0 = arith.constant 0 : index
      %c0_7 = arith.constant 0 : index
      %14 = vector.load %arg5[%c0, %c0_7] : memref<8x128xf32, #tpu.memory_space<vmem>>, vector<8x128xf32>
      %15 = vector.shape_cast %14 : vector<8x128xf32> to vector<1x8x128xf32>
      %cst = arith.constant dense<0.000000e+00> : vector<1xf32>
      %16 = vector.multi_reduction <add>, %15, %cst [1, 2] : vector<1x8x128xf32> to vector<1xf32>
      %17 = vector.shape_cast %16 : vector<1xf32> to vector<1x1x1xf32>
      %18 = vector.extract %17[0, 0, 0] : f32 from vector<1x1x1xf32>
      %c0_8 = arith.constant 0 : index
      %c0_9 = arith.constant 0 : index
      %19 = vector.load %arg6[%c0_8, %c0_9] : memref<8x128xf32, #tpu.memory_space<vmem>>, vector<8x128xf32>
      %20 = vector.shape_cast %19 : vector<8x128xf32> to vector<1x8x128xf32>
      %cst_10 = arith.constant dense<0.000000e+00> : vector<1xf32>
      %21 = vector.multi_reduction <add>, %20, %cst_10 [1, 2] : vector<1x8x128xf32> to vector<1xf32>
      %22 = vector.shape_cast %21 : vector<1xf32> to vector<1x1x1xf32>
      %23 = vector.extract %22[0, 0, 0] : f32 from vector<1x1x1xf32>
      %cst_11 = arith.constant 5.000000e-01 : f32
      %24 = arith.mulf %cst_11, %23 : f32
      %25 = arith.addf %18, %24 : f32
      %cst_12 = arith.constant 4.8828125E-4 : f32
      %26 = arith.mulf %25, %cst_12 : f32
      %27 = vector.broadcast %26 : f32 to vector<1x8x128xf32>
      %c0_13 = arith.constant 0 : index
      %c0_14 = arith.constant 0 : index
      %c0_15 = arith.constant 0 : index
      %28 = vector.load %arg4[%c0_13, %c0_14, %c0_15] : memref<1x8x128xf32, #tpu.memory_space<vmem>>, vector<1x8x128xf32>
      tpu.vector_store %arg4[%c0_13, %c0_14, %c0_15], %27 {strides = array<i32>} : memref<1x8x128xf32, #tpu.memory_space<vmem>>, vector<1x8x128xf32>,
    } else {
    }
    return
  }
  func.func @transform_0(%arg0: i32, %arg1: i32) -> (i32, i32) {
    %c1_i32 = arith.constant 1 : i32
    %0 = arith.muli %arg0, %c1_i32 : i32
    %1 = arith.addi %0, %arg1 : i32
    %c0_i32 = arith.constant 0 : i32
    %2 = arith.minsi %1, %c0_i32 : i32
    %c0_i32_0 = arith.constant 0 : i32
    %c0_i32_1 = arith.constant 0 : i32
    return %2, %c0_i32_0 : i32, i32
  }
  func.func @transform_1(%arg0: i32, %arg1: i32) -> (i32, i32) {
    %c1_i32 = arith.constant 1 : i32
    %0 = arith.muli %arg0, %c1_i32 : i32
    %1 = arith.addi %0, %arg1 : i32
    %c0_i32 = arith.constant 0 : i32
    %2 = arith.minsi %1, %c0_i32 : i32
    %c0_i32_0 = arith.constant 0 : i32
    %c0_i32_1 = arith.constant 0 : i32
    return %2, %c0_i32_0 : i32, i32
  }
  func.func @transform_2(%arg0: i32, %arg1: i32) -> (i32, i32, i32) {
    %c0_i32 = arith.constant 0 : i32
    %c0_i32_0 = arith.constant 0 : i32
    %c0_i32_1 = arith.constant 0 : i32
    return %arg0, %c0_i32, %c0_i32_0 : i32, i32, i32
  }
}

</mosaic_0001>

<llo_original>
// kernel: tpu_custom_call.1
$region0: #{tpu_custom_call.1}
  #allocation0 [shape = 'u32[]', space=smem, size = 0x4, offset = 0x4, fixed_abs, tag = 'smem constant byte address 0x4 - core index']
  #allocation1 [shape = 'u32[144,128]{1,0:T(1,128)}', space=vmem, size = 0x12000, scoped, tag = 'internal scratch']
  #allocation2 [shape = 'f32[8,128]{1,0:T(8,128)}', space=vmem, size = 0x1000, scoped, tag = 'scratch operand']
  #allocation3 [shape = 'f32[8,128]{1,0:T(8,128)}', space=vmem, size = 0x1000, scoped, tag = 'scratch operand']
  %s0 = inlined_call_operand.hbm [shape: f32[16,128], index: 0, kind: input, shape index: {}]
  %s1 = inlined_call_operand.hbm [shape: f32[16,128], index: 1, kind: input, shape index: {}]
  %s2 = inlined_call_operand.hbm [shape: f32[1,8,128], index: 2, kind: output, shape index: {}]
  %s3 = sld [smem:[#allocation0]]
  $region42: #{tpu_custom_call.1} parent=0
    _
  %s5 = ssub.s32 1, %s3
  %s6 = scalar_select 0, %s5, %s3
  $region1: #{tpu_custom_call.1} parent=0
    #allocation4 [shape = 'u8[8192]{0}', space=vmem, size = 0x2000, scoped, tag = 'input window, operand 0, single buffered']
    #allocation5 [shape = 's32[1]{0}', space=sflag, size = 0x4, scoped, tag = 'scoped memory for tpu_custom_call.1']
    #allocation6 [shape = 's32[1]{0}', space=sflag, size = 0x4, scoped, tag = 'scoped memory for tpu_custom_call.1']
    #allocation7 [shape = 'u8[8192]{0}', space=vmem, size = 0x2000, scoped, tag = 'input window, operand 1, single buffered']
    #allocation8 [shape = 's32[1]{0}', space=sflag, size = 0x4, scoped, tag = 'scoped memory for tpu_custom_call.1']
    #allocation9 [shape = 'u8[4096]{0}', space=vmem, size = 0x1000, scoped, tag = 'output window, operand 0, single buffered']
    %7 = vsyncpa [#allocation5], 0
    %8 = vsyncpa [#allocation8], 0
    %9 = vsyncpa [#allocation6], 0
    // Predicated region
    $region2: #{tpu_custom_call.1} parent=1 // pred_check
      _
    $region3: #{tpu_custom_call.1} parent=1 // pred_check_branch
      %11 = sbr.rel (0) target = $region5
    $region4: #{tpu_custom_call.1} parent=1 // pred_region
      %s12 = sadd.s32 0, 0
      %p13 = scmp.lt.s32.totalorder %s12, 0
      %s14 = scalar_select %p13, %s12, 0
      %s15 = smul.u32 2, %s14
      %s17 = ssub.s32 256, 256
      %18 = vsyncadd [#allocation5], %s17
      %s19 = smul.addr %s15, 128
      %s20 = scalar_lea.hbm %s0, %s19
      %s21 = sshll.u32 [#allocation4], 4
      %s22 = int_to_ptr.vmem [resolvable:$true] %s21
      %27 = dma.hbm_to_vmem [thread:$0]  %s20, 256, %s22, [#allocation5], 128, 128, 8
    $region5: #{tpu_custom_call.1} parent=1 // pred_fallthru
      _
    // Predicated region
    $region6: #{tpu_custom_call.1} parent=1 // pred_check
      _
    $region7: #{tpu_custom_call.1} parent=1 // pred_check_branch
      %29 = sbr.rel (0) target = $region9
    $region8: #{tpu_custom_call.1} parent=1 // pred_region
      %s30 = sadd.s32 0, 0
      %p31 = scmp.lt.s32.totalorder %s30, 0
      %s32 = scalar_select %p31, %s30, 0
      %s33 = smul.u32 2, %s32
      %s35 = ssub.s32 256, 256
      %36 = vsyncadd [#allocation8], %s35
      %s37 = smul.addr %s33, 128
      %s38 = scalar_lea.hbm %s1, %s37
      %s39 = sshll.u32 [#allocation7], 4
      %s40 = int_to_ptr.vmem [resolvable:$true] %s39
      %45 = dma.hbm_to_vmem [thread:$0]  %s38, 256, %s40, [#allocation8], 128, 128, 8
    $region9: #{tpu_custom_call.1} parent=1 // pred_fallthru
      _
    // Predicated region
    $region10: #{tpu_custom_call.1} parent=1 // pred_check
      _
    $region11: #{tpu_custom_call.1} parent=1 // pred_check_branch
      %47 = sbr.rel (0) target = $region13
    $region12: #{tpu_custom_call.1} parent=1 // pred_region
      %48 = dma.done [#allocation5], 256
    $region13: #{tpu_custom_call.1} parent=1 // pred_fallthru
      _
    // Predicated region
    $region14: #{tpu_custom_call.1} parent=1 // pred_check
      _
    $region15: #{tpu_custom_call.1} parent=1 // pred_check_branch
      %50 = sbr.rel (0) target = $region17
    $region16: #{tpu_custom_call.1} parent=1 // pred_region
      %51 = dma.done [#allocation8], 256
    $region17: #{tpu_custom_call.1} parent=1 // pred_fallthru
      _
    %s52 = sadd.s32 0, 0
    %p53 = scmp.lt.s32.totalorder %s52, 0
    %s54 = scalar_select %p53, %s52, 0
    %s55 = smul.u32 2, %s54
    %s56 = sadd.s32 0, 0
    %p57 = scmp.lt.s32.totalorder %s56, 0
    %s58 = scalar_select %p57, %s56, 0
    %s59 = smul.u32 2, %s58
    %p60 = scmp.eq.s32.totalorder 0, 0
    // Predicated region
    $region18: #{tpu_custom_call.1} parent=1 // pred_check
      %p61 = pneg %p60
    $region19: #{tpu_custom_call.1} parent=1 // pred_check_branch
      %63 = sbr.rel (%p61) target = $region21
    $region20: #{tpu_custom_call.1} parent=1 // pred_region
      %64 = vst [vmem:[#allocation2] sm:$0xff] 0.0
      %65 = vst [vmem:[#allocation3] sm:$0xff] 0.0
    $region21: #{tpu_custom_call.1} parent=1 // pred_fallthru
      _
    %s66 = sadd.s32 0, 0
    %p67 = scmp.lt.s32.totalorder %s66, 0
    // Predicated region
    $region22: #{tpu_custom_call.1} parent=1 // pred_check
      %p68 = pneg %p67
    $region23: #{tpu_custom_call.1} parent=1 // pred_check_branch
      %70 = sbr.rel (%p68) target = $region25
    $region24: #{tpu_custom_call.1} parent=1 // pred_region
      %v71 = vld [vmem:[#allocation4] sm:$0xff]
      %v72 = vld [vmem:[#allocation4 + $0x8] sm:$0xff]
      %v73 = vld [vmem:[#allocation7] sm:$0xff]
      %v74 = vld [vmem:[#allocation7 + $0x8] sm:$0xff]
      %v75 = vsub.f32 %v71, %v73
      %v76 = vsub.f32 %v72, %v74
      %v77 = vld [vmem:[#allocation2] sm:$0xff]
      %v78 = vmul.f32 %v75, %v75
      %v79 = vmul.f32 %v76, %v76
      %v80 = vadd.f32 %v78, %v79
      %v81 = vadd.f32 %v77, %v80
      %82 = vst [vmem:[#allocation2] sm:$0xff] %v81
      %v83 = vld [vmem:[#allocation3] sm:$0xff]
      %v84 = vand.u32 2147483647, %v75
      %v85 = vand.u32 2147483647, %v76
      %v86 = vadd.f32 %v84, %v85
      %v87 = vadd.f32 %v83, %v86
      %88 = vst [vmem:[#allocation3] sm:$0xff] %v87
    $region25: #{tpu_custom_call.1} parent=1 // pred_fallthru
      _
    %p89 = scmp.ge.s32.totalorder %s66, 0
    // Predicated region
    $region26: #{tpu_custom_call.1} parent=1 // pred_check
      %p90 = pneg %p89
    $region27: #{tpu_custom_call.1} parent=1 // pred_check_branch
      %92 = sbr.rel (%p90) target = $region29
    $region28: #{tpu_custom_call.1} parent=1 // pred_region
      %v93 = vlaneseq
      %v94 = vshrl.u32 %v93, 7
      %v95 = vadd.s32 %v94, 8
      %v96 = vlaneseq
      %v97 = vand.u32 %v96, 127
      %v98 = vld [vmem:[#allocation4] sm:$0xff]
      %v99 = vld [vmem:[#allocation4 + $0x8] sm:$0xff]
      %v100 = vld [vmem:[#allocation7] sm:$0xff]
      %v101 = vld [vmem:[#allocation7 + $0x8] sm:$0xff]
      %v102 = vsub.f32 %v98, %v100
      %v103 = vsub.f32 %v99, %v101
      %s104 = smul.u32 %s66, 16
      %s105 = sadd.s32 %s104, 0
      %v106 = vstv %s105
      %v107 = vadd.s32 %v106, %v94
      %v108 = vadd.s32 %v106, %v95
      %v109 = vmul.u32 %v107, 128
      %v110 = vmul.u32 %v108, 128
      %v111 = vadd.s32 %v109, %v97
      %v112 = vadd.s32 %v110, %v97
      %vm113 = vcmp.lt.s32.totalorder %v111, 2048
      %vm114 = vcmp.lt.s32.totalorder %v112, 2048
      %v115 = vsel %vm113, %v102, 0.0
      %v116 = vsel %vm114, %v103, 0.0
      %v117 = vld [vmem:[#allocation2] sm:$0xff]
      %v118 = vmul.f32 %v115, %v115
      %v119 = vmul.f32 %v116, %v116
      %v120 = vadd.f32 %v118, %v119
      %v121 = vadd.f32 %v117, %v120
      %122 = vst [vmem:[#allocation2] sm:$0xff] %v121
      %v123 = vld [vmem:[#allocation3] sm:$0xff]
      %v124 = vand.u32 2147483647, %v115
      %v125 = vand.u32 2147483647, %v116
      %v126 = vadd.f32 %v124, %v125
      %v127 = vadd.f32 %v123, %v126
      %128 = vst [vmem:[#allocation3] sm:$0xff] %v127
    $region29: #{tpu_custom_call.1} parent=1 // pred_fallthru
      _
    // Predicated region
    $region30: #{tpu_custom_call.1} parent=1 // pred_check
      %p129 = pneg %p60
    $region31: #{tpu_custom_call.1} parent=1 // pred_check_branch
      %131 = sbr.rel (%p129) target = $region33
    $region32: #{tpu_custom_call.1} parent=1 // pred_region
      %v132 = vld [vmem:[#allocation2] sm:$0xff]
      %133 = vadd.xlane.f32.xlu0 %v132
      %v134 = vpop.xlane.xlu0 %133
      %v135 = vrot.slane %v134, 4
      %v136 = vadd.f32 %v134, %v135
      %v137 = vrot.slane %v136, 2
      %v138 = vadd.f32 %v136, %v137
      %v139 = vrot.slane %v138, 1
      %v140 = vadd.f32 %v138, %v139
      %s141 = vtos %v140
      %v142 = vld [vmem:[#allocation3] sm:$0xff]
      %143 = vadd.xlane.f32.xlu0 %v142
      %v144 = vpop.xlane.xlu0 %143
      %v145 = vrot.slane %v144, 4
      %v146 = vadd.f32 %v144, %v145
      %v147 = vrot.slane %v146, 2
      %v148 = vadd.f32 %v146, %v147
      %v149 = vrot.slane %v148, 1
      %v150 = vadd.f32 %v148, %v149
      %s151 = vtos %v150
      %s152 = smul.f32 %s151, 0.5
      %s153 = sadd.f32 %s141, %s152
      %s154 = smul.f32 %s153, 0.00048828125
      %v155 = vstv %s154
      %156 = vst [vmem:[#allocation9] sm:$0xff] %v155
    $region33: #{tpu_custom_call.1} parent=1 // pred_fallthru
      _
    // Predicated region
    $region34: #{tpu_custom_call.1} parent=1 // pred_check
      _
    $region35: #{tpu_custom_call.1} parent=1 // pred_check_branch
      %158 = sbr.rel (0) target = $region37
    $region36: #{tpu_custom_call.1} parent=1 // pred_region
      %s160 = ssub.s32 128, 128
      %161 = vsyncadd [#allocation6], %s160
      %s163 = sshll.u32 [#allocation9], 4
      %s164 = int_to_ptr.vmem [resolvable:$true] %s163
      %166 = dma.vmem_to_hbm [thread:$0]  %s164, 128, %s2, [#allocation6]
    $region37: #{tpu_custom_call.1} parent=1 // pred_fallthru
      _
    // Predicated region
    $region38: #{tpu_custom_call.1} parent=1 // pred_check
      _
    $region39: #{tpu_custom_call.1} parent=1 // pred_check_branch
      %168 = sbr.rel (0) target = $region41
    $region40: #{tpu_custom_call.1} parent=1 // pred_region
      %169 = dma.done [#allocation6], 128
    $region41: #{tpu_custom_call.1} parent=1 // pred_fallthru
      _
    %170 = vsyncpa [#allocation5], 1
    %171 = vsyncpa [#allocation8], 1
    %172 = vsyncpa [#allocation6], 1

</llo_original>
